<compile_context>
chip_gen: v5e
topology: v5e:2x2
jax: 0.10.0
libtpu: 0.0.40
codegen_flags: <defaults>
</compile_context>

<pallas_src>
import jax
import jax.numpy as jnp
import numpy as np
from jax.experimental import pallas as pl
from jax.experimental.pallas import tpu as pltpu


def _round_up(x, m):
    return ((x + m - 1) // m) * m


# ----------------------------- Pallas kernel ------------------------------- #
def bi2e_kernel(e1_ref, e2_ref, rel_ref, g_ref, out_ref):
    # e1_ref/e2_ref: (TB, 2H) bf16, rel_ref: (TB, 4H) bf16, g: (TB, 1) f32, out: (TB, 1) f32
    two_h = e1_ref.shape[-1]

    # Upcast to f32 after load (v5e has no bf16 VPU; f32 compute is safe everywhere).
    e1 = e1_ref[...].astype(jnp.float32)
    e2 = e2_ref[...].astype(jnp.float32)
    rel_fwd = rel_ref[:, :two_h].astype(jnp.float32)   # (ro | rs)   — lane-aligned slice
    rel_bwd = rel_ref[:, two_h:].astype(jnp.float32)   # (rro | rrs)

    # Fused form: the o/s halves just split the L1 sum, so two full-width
    # reductions are exactly equivalent to the original four.
    s_fwd = jnp.sum(jnp.abs(e1 * rel_fwd - e2), axis=-1)   # (TB,)
    s_bwd = jnp.sum(jnp.abs(e2 * rel_bwd - e1), axis=-1)   # (TB,)

    out_ref[...] = (g_ref[:, 0] - 0.25 * (s_fwd + s_bwd))[:, None]


def bi2e_score_pallas(e1, e2, rel, g, *, tb_max=1024,
                      vmem_budget_bytes=14 * 1024 * 1024):
    """e1,e2: (B,2H); rel: (B,4H); g: (B,1) f32 -> (B,1) f32 Bi2E scores."""
    B, two_h = e1.shape
    four_h = rel.shape[-1]
    assert four_h == 2 * two_h
    # The in-kernel lane slice of rel at offset 2H must land on a 128-lane boundary.
    assert two_h % 128 == 0, "Bi2E Pallas kernel requires hidden_dim % 64 == 0"

    itemsize = jnp.dtype(e1.dtype).itemsize

    # Pick the largest batch tile that (a) covers the (padded) batch, (b) is a
    # sublane multiple, and (c) keeps double-buffered inputs under the VMEM
    # budget (safe under the default scoped-VMEM limit on v5e/v6e/v7x).
    def tile_bytes(t):
        emb = (two_h + two_h + four_h) * itemsize       # e1 + e2 + rel per row
        return 2 * t * (emb + 4 + 4)                    # double-buffered + g + out

    tb = min(tb_max, _round_up(B, 8))
    while tb > 8 and tile_bytes(tb) > vmem_budget_bytes:
        tb = max(8, _round_up(tb // 2, 8))

    # Pad batch to a tile multiple; extra rows are garbage and sliced off.
    B_pad = _round_up(B, tb)
    if B_pad != B:
        pad = B_pad - B
        e1 = jnp.pad(e1, ((0, pad), (0, 0)))
        e2 = jnp.pad(e2, ((0, pad), (0, 0)))
        rel = jnp.pad(rel, ((0, pad), (0, 0)))
        g = jnp.pad(g, ((0, pad), (0, 0)))

    grid = (B_pad // tb,)
    out = pl.pallas_call(
        bi2e_kernel,
        out_shape=jax.ShapeDtypeStruct((B_pad, 1), jnp.float32),
        grid_spec=pltpu.PrefetchScalarGridSpec(
            num_scalar_prefetch=0,
            grid=grid,
            in_specs=[
                pl.BlockSpec((tb, two_h), lambda i: (i, 0)),
                pl.BlockSpec((tb, two_h), lambda i: (i, 0)),
                pl.BlockSpec((tb, four_h), lambda i: (i, 0)),
                pl.BlockSpec((tb, 1), lambda i: (i, 0)),
            ],
            out_specs=pl.BlockSpec((tb, 1), lambda i: (i, 0)),
        ),
        compiler_params=pltpu.CompilerParams(
            dimension_semantics=("parallel",)),   # shards across TCs on v7x
    )(e1, e2, rel, g)
    return out[:B]


# ------------------------------ Model wrapper ------------------------------ #
class KGEModelJax:
    """Pallas/JAX port of KGEModel with model_name='bi2e' (single-mode forward)."""

    def __init__(self, nentity, nrelation, hidden_dim, gamma, key,
                 param_dtype=jnp.bfloat16):
        self.nentity = nentity
        self.nrelation = nrelation
        self.hidden_dim = hidden_dim
        self.epsilon = 2.0
        self.gamma = float(gamma)
        self.embedding_range = (self.gamma + self.epsilon) / hidden_dim
        self.param_dtype = param_dtype

        k1, k2, k3 = jax.random.split(key, 3)
        rng = self.embedding_range
        # gammas: every entity initialized to gamma (matches .repeat(nentity, 1))
        self.gammas = jnp.full((nentity, 1), self.gamma, dtype=jnp.float32)
        # entity_embedding: (nentity, hidden_dim * 2), uniform(-rng, rng)
        self.entity_embedding = jax.random.uniform(
            k1, (nentity, hidden_dim * 2), jnp.float32, -rng, rng).astype(param_dtype)
        # relation_embedding: (nrelation, hidden_dim * 2)  (unused by Bi2E)
        self.relation_embedding = jax.random.uniform(
            k2, (nrelation, hidden_dim * 2), jnp.float32, -rng, rng).astype(param_dtype)
        # relation_embedding_bi: (nrelation, hidden_dim * 4)
        self.relation_embedding_bi = jax.random.uniform(
            k3, (nrelation, hidden_dim * 4), jnp.float32, -rng, rng).astype(param_dtype)

    def forward(self, sample):
        """sample: (B, 3) int32 triples -> (B, 1) f32 Bi2E scores (mode='single')."""
        head = sample[:, 0]
        rel_id = sample[:, 1]
        tail = sample[:, 2]

        # Embedding gathers (glue, plain JAX).
        # TODO(synk): fuse these gathers into the Pallas pipeline via scalar-prefetched
        # ids + manual DMA row-gather from the HBM tables to avoid the round-trip.
        e1 = jnp.take(self.entity_embedding, head, axis=0)          # (B, 2H) bf16
        e2 = jnp.take(self.entity_embedding, tail, axis=0)          # (B, 2H) bf16
        rel = jnp.take(self.relation_embedding_bi, rel_id, axis=0)  # (B, 4H) bf16
        gh = jnp.take(self.gammas, head, axis=0)                    # (B, 1)  f32
        gt = jnp.take(self.gammas, tail, axis=0)                    # (B, 1)  f32
        g = 0.5 * (gh + gt)                                         # (B, 1)  f32

        return bi2e_score_pallas(e1, e2, rel, g)

    # Pure-JAX reference mirroring the PyTorch Bi2E math exactly
    # (same bf16-stored parameters, f32 compute).
    def forward_ref(self, sample):
        head = sample[:, 0]
        rel_id = sample[:, 1]
        tail = sample[:, 2]
        B = sample.shape[0]
        H = self.hidden_dim

        e1 = jnp.take(self.entity_embedding, head, axis=0).astype(jnp.float32)
        e2 = jnp.take(self.entity_embedding, tail, axis=0).astype(jnp.float32)
        rel = jnp.take(self.relation_embedding_bi, rel_id, axis=0).astype(jnp.float32)
        e1 = e1.reshape(B, 1, 2 * H)
        e2 = e2.reshape(B, 1, 2 * H)
        rel = rel[:, None, :]
        ro, rs, rro, rrs = jnp.split(rel, 4, axis=-1)
        e1_o, e1_s = jnp.split(e1, 2, axis=-1)
        e2_o, e2_s = jnp.split(e2, 2, axis=-1)
        gh = jnp.take(self.gammas, head, axis=0)  # (B,1)
        gt = jnp.take(self.gammas, tail, axis=0)  # (B,1)

        score_o = gh - jnp.sum(jnp.abs(e1_o * ro - e2_o), axis=-1)
        score_s = gh - jnp.sum(jnp.abs(e1_s * rs - e2_s), axis=-1)
        score_o1 = gt - jnp.sum(jnp.abs(e2_o * rro - e1_o), axis=-1)
        score_s1 = gt - jnp.sum(jnp.abs(e2_s * rrs - e1_s), axis=-1)
        return (score_o + score_s + score_o1 + score_s1) / 4.0


if __name__ == "__main__":
    nentity = 32
    nrelation = 8
    hidden_dim = 128   # H; entity dim = 2H = 256, bi-relation dim = 4H = 512
    gamma = 12.0

    key = jax.random.PRNGKey(0)
    k_model, k_h, k_r, k_t = jax.random.split(key, 4)
    model = KGEModelJax(nentity, nrelation, hidden_dim, gamma, k_model)

    def make_sample(batch, kh, kr, kt):
        heads = jax.random.randint(kh, (batch,), 0, nentity, dtype=jnp.int32)
        rels = jax.random.randint(kr, (batch,), 0, nrelation, dtype=jnp.int32)
        tails = jax.random.randint(kt, (batch,), 0, nentity, dtype=jnp.int32)
        return jnp.stack([heads, rels, tails], axis=1)  # (B, 3)

    # Case 1: small, tile-aligned batch.
    sample = make_sample(16, k_h, k_r, k_t)
    score = jax.block_until_ready(model.forward(sample))
    ref = jax.block_until_ready(model.forward_ref(sample))
    np.testing.assert_allclose(np.asarray(score), np.asarray(ref),
                               rtol=1e-4, atol=1e-3)
    assert score.shape == (16, 1)

    # Case 2: batch not a multiple of the sublane/tile size (exercises padding path).
    k_h2, k_r2, k_t2 = jax.random.split(jax.random.PRNGKey(1), 3)
    sample2 = make_sample(50, k_h2, k_r2, k_t2)
    score2 = jax.block_until_ready(model.forward(sample2))
    ref2 = jax.block_until_ready(model.forward_ref(sample2))
    np.testing.assert_allclose(np.asarray(score2), np.asarray(ref2),
                               rtol=1e-4, atol=1e-3)
    assert score2.shape == (50, 1)

    print("KERNEL_OK")
</pallas_src>

<mosaic_0001>
module attributes {stable_mosaic.version = 11 : i64} {
  func.func @bi2e_kernel(%arg0: i32, %arg1: memref<16x256xbf16, #tpu.memory_space<vmem>>, %arg2: memref<16x256xbf16, #tpu.memory_space<vmem>>, %arg3: memref<16x512xbf16, #tpu.memory_space<vmem>>, %arg4: memref<16x1xf32, #tpu.memory_space<vmem>>, %arg5: memref<16x1xf32, #tpu.memory_space<vmem>>) attributes {dimension_semantics = [#tpu.dimension_semantics<parallel>], iteration_bounds = array<i64: 1>, scalar_prefetch = 0 : i64, scratch_operands = 0 : i64, tpu.core_type = #tpu.core_type<tc>, window_params = [{transform_indices = @transform_0, window_bounds = array<i64: 16, 256>}, {transform_indices = @transform_1, window_bounds = array<i64: 16, 256>}, {transform_indices = @transform_2, window_bounds = array<i64: 16, 512>}, {transform_indices = @transform_3, window_bounds = array<i64: 16, 1>}, {transform_indices = @transform_4, window_bounds = array<i64: 16, 1>}]} {
    %c0 = arith.constant 0 : index
    %c0_0 = arith.constant 0 : index
    %0 = vector.load %arg1[%c0, %c0_0] : memref<16x256xbf16, #tpu.memory_space<vmem>>, vector<16x256xbf16>
    %1 = arith.extf %0 : vector<16x256xbf16> to vector<16x256xf32>
    %c0_1 = arith.constant 0 : index
    %c0_2 = arith.constant 0 : index
    %2 = vector.load %arg2[%c0_1, %c0_2] : memref<16x256xbf16, #tpu.memory_space<vmem>>, vector<16x256xbf16>
    %3 = arith.extf %2 : vector<16x256xbf16> to vector<16x256xf32>
    %c0_3 = arith.constant 0 : index
    %c0_4 = arith.constant 0 : index
    %4 = vector.load %arg3[%c0_3, %c0_4] : memref<16x512xbf16, #tpu.memory_space<vmem>>, vector<16x256xbf16>
    %5 = arith.extf %4 : vector<16x256xbf16> to vector<16x256xf32>
    %c0_5 = arith.constant 0 : index
    %c256 = arith.constant 256 : index
    %6 = vector.load %arg3[%c0_5, %c256] : memref<16x512xbf16, #tpu.memory_space<vmem>>, vector<16x256xbf16>
    %7 = arith.extf %6 : vector<16x256xbf16> to vector<16x256xf32>
    %8 = arith.mulf %1, %5 : vector<16x256xf32>
    %9 = arith.subf %8, %3 : vector<16x256xf32>
    %10 = math.absf %9 : vector<16x256xf32>
    %cst = arith.constant dense<0.000000e+00> : vector<16xf32>
    %11 = vector.multi_reduction <add>, %10, %cst [1] : vector<16x256xf32> to vector<16xf32>
    %12 = arith.mulf %3, %7 : vector<16x256xf32>
    %13 = arith.subf %12, %1 : vector<16x256xf32>
    %14 = math.absf %13 : vector<16x256xf32>
    %cst_6 = arith.constant dense<0.000000e+00> : vector<16xf32>
    %15 = vector.multi_reduction <add>, %14, %cst_6 [1] : vector<16x256xf32> to vector<16xf32>
    %c0_7 = arith.constant 0 : index
    %c0_8 = arith.constant 0 : index
    %16 = vector.load %arg4[%c0_7, %c0_8] : memref<16x1xf32, #tpu.memory_space<vmem>>, vector<16x1xf32>
    %17 = vector.shape_cast %16 : vector<16x1xf32> to vector<16xf32>
    %18 = arith.addf %11, %15 : vector<16xf32>
    %cst_9 = arith.constant 2.500000e-01 : f32
    %19 = vector.broadcast %cst_9 : f32 to vector<16xf32>
    %20 = arith.mulf %19, %18 : vector<16xf32>
    %21 = arith.subf %17, %20 : vector<16xf32>
    %22 = vector.shape_cast %21 : vector<16xf32> to vector<16x1xf32>
    %c0_10 = arith.constant 0 : index
    %c0_11 = arith.constant 0 : index
    %23 = vector.load %arg5[%c0_10, %c0_11] : memref<16x1xf32, #tpu.memory_space<vmem>>, vector<16x1xf32>
    tpu.vector_store %arg5[%c0_10, %c0_11], %22 {strides = array<i32>} : memref<16x1xf32, #tpu.memory_space<vmem>>, vector<16x1xf32>,
    return
  }
  func.func @transform_0(%arg0: i32) -> (i32, i32) {
    %c0_i32 = arith.constant 0 : i32
    %c0_i32_0 = arith.constant 0 : i32
    return %arg0, %c0_i32 : i32, i32
  }
  func.func @transform_1(%arg0: i32) -> (i32, i32) {
    %c0_i32 = arith.constant 0 : i32
    %c0_i32_0 = arith.constant 0 : i32
    return %arg0, %c0_i32 : i32, i32
  }
  func.func @transform_2(%arg0: i32) -> (i32, i32) {
    %c0_i32 = arith.constant 0 : i32
    %c0_i32_0 = arith.constant 0 : i32
    return %arg0, %c0_i32 : i32, i32
  }
  func.func @transform_3(%arg0: i32) -> (i32, i32) {
    %c0_i32 = arith.constant 0 : i32
    %c0_i32_0 = arith.constant 0 : i32
    return %arg0, %c0_i32 : i32, i32
  }
  func.func @transform_4(%arg0: i32) -> (i32, i32) {
    %c0_i32 = arith.constant 0 : i32
    %c0_i32_0 = arith.constant 0 : i32
    return %arg0, %c0_i32 : i32, i32
  }
}

</mosaic_0001>

<llo_original>
// kernel: tpu_custom_call.1
$region0: #{tpu_custom_call.1}
  #allocation0 [shape = 'u32[]', space=smem, size = 0x4, offset = 0x4, fixed_abs, tag = 'smem constant byte address 0x4 - core index']
  #allocation1 [shape = 'u32[72,128]{1,0:T(1,128)}', space=vmem, size = 0x9000, scoped, tag = 'internal scratch']
  %s0 = inlined_call_operand.vmem [shape: bf16[16,256], index: 0, kind: input, shape index: {}]
  %s1 = inlined_call_operand.hbm [shape: bf16[16,256], index: 1, kind: input, shape index: {}]
  %s2 = inlined_call_operand.hbm [shape: bf16[16,512], index: 2, kind: input, shape index: {}]
  %s3 = inlined_call_operand.vmem [shape: f32[16,1], index: 3, kind: input, shape index: {}]
  %s4 = inlined_call_operand.vmem [shape: f32[16,1], index: 4, kind: output, shape index: {}]
  %s5 = sld [smem:[#allocation0]]
  $region34: #{tpu_custom_call.1} parent=0
    _
  %s7 = ssub.s32 1, %s5
  %s8 = scalar_select 0, %s7, %s5
  $region1: #{tpu_custom_call.1} parent=0
    #allocation2 [shape = 'u8[8192]{0}', space=vmem, size = 0x2000, scoped, tag = 'input window, operand 1, single buffered']
    #allocation3 [shape = 's32[1]{0}', space=sflag, size = 0x4, scoped, tag = 'scoped memory for tpu_custom_call.1']
    #allocation4 [shape = 'u8[16384]{0}', space=vmem, size = 0x4000, scoped, tag = 'input window, operand 2, single buffered']
    #allocation5 [shape = 's32[1]{0}', space=sflag, size = 0x4, scoped, tag = 'scoped memory for tpu_custom_call.1']
    %9 = vsyncpa [#allocation3], 0
    %10 = vsyncpa [#allocation5], 0
    // Predicated region
    $region2: #{tpu_custom_call.1} parent=1 // pred_check
      _
    $region3: #{tpu_custom_call.1} parent=1 // pred_check_branch
      %12 = sbr.rel (0) target = $region5
    $region4: #{tpu_custom_call.1} parent=1 // pred_region
      _
    $region5: #{tpu_custom_call.1} parent=1 // pred_fallthru
      _
    // Predicated region
    $region6: #{tpu_custom_call.1} parent=1 // pred_check
      _
    $region7: #{tpu_custom_call.1} parent=1 // pred_check_branch
      %14 = sbr.rel (0) target = $region9
    $region8: #{tpu_custom_call.1} parent=1 // pred_region
      %16 = vsyncadd [#allocation3], 0
      %s17 = sshll.u32 %s1, 4
      %s18 = int_to_ptr.hbm [resolvable:$true] %s17
      %s19 = sshll.u32 [#allocation2], 4
      %s20 = int_to_ptr.vmem [resolvable:$true] %s19
      %25 = dma.hbm_to_vmem [thread:$0]  %s18, 256, %s20, [#allocation3], 128, 128, 8
    $region9: #{tpu_custom_call.1} parent=1 // pred_fallthru
      _
    // Predicated region
    $region10: #{tpu_custom_call.1} parent=1 // pred_check
      _
    $region11: #{tpu_custom_call.1} parent=1 // pred_check_branch
      %27 = sbr.rel (0) target = $region13
    $region12: #{tpu_custom_call.1} parent=1 // pred_region
      %29 = vsyncadd [#allocation5], 0
      %s30 = sshll.u32 %s2, 4
      %s31 = int_to_ptr.hbm [resolvable:$true] %s30
      %s32 = sshll.u32 [#allocation4], 4
      %s33 = int_to_ptr.vmem [resolvable:$true] %s32
      %38 = dma.hbm_to_vmem [thread:$0]  %s31, 512, %s33, [#allocation5], 256, 256, 16
    $region13: #{tpu_custom_call.1} parent=1 // pred_fallthru
      _
    // Predicated region
    $region14: #{tpu_custom_call.1} parent=1 // pred_check
      _
    $region15: #{tpu_custom_call.1} parent=1 // pred_check_branch
      %40 = sbr.rel (0) target = $region17
    $region16: #{tpu_custom_call.1} parent=1 // pred_region
      _
    $region17: #{tpu_custom_call.1} parent=1 // pred_fallthru
      _
    // Predicated region
    $region18: #{tpu_custom_call.1} parent=1 // pred_check
      _
    $region19: #{tpu_custom_call.1} parent=1 // pred_check_branch
      %42 = sbr.rel (0) target = $region21
    $region20: #{tpu_custom_call.1} parent=1 // pred_region
      %44 = dma.done [#allocation3], 256
    $region21: #{tpu_custom_call.1} parent=1 // pred_fallthru
      _
    // Predicated region
    $region22: #{tpu_custom_call.1} parent=1 // pred_check
      _
    $region23: #{tpu_custom_call.1} parent=1 // pred_check_branch
      %46 = sbr.rel (0) target = $region25
    $region24: #{tpu_custom_call.1} parent=1 // pred_region
      %48 = dma.done [#allocation5], 512
    $region25: #{tpu_custom_call.1} parent=1 // pred_fallthru
      _
    %v49 = vld [vmem:[%s0] sm:$0xff]
    %v50 = vld [vmem:[%s0 + $0x8] sm:$0xff]
    %v51 = vunpack.c.l.bf16 %v49
    %v52 = vunpack.c.h.bf16 %v49
    %v53 = vunpack.c.l.bf16 %v50
    %v54 = vunpack.c.h.bf16 %v50
    %v55 = vld [vmem:[#allocation2] sm:$0xff]
    %v56 = vld [vmem:[#allocation2 + $0x8] sm:$0xff]
    %v57 = vunpack.c.l.bf16 %v55
    %v58 = vunpack.c.h.bf16 %v55
    %v59 = vunpack.c.l.bf16 %v56
    %v60 = vunpack.c.h.bf16 %v56
    %v61 = vld [vmem:[#allocation4] sm:$0xff]
    %v62 = vld [vmem:[#allocation4 + $0x10] sm:$0xff]
    %v63 = vunpack.c.l.bf16 %v61
    %v64 = vunpack.c.h.bf16 %v61
    %v65 = vunpack.c.l.bf16 %v62
    %v66 = vunpack.c.h.bf16 %v62
    %v67 = vld [vmem:[#allocation4 + $0x8] sm:$0xff]
    %v68 = vld [vmem:[#allocation4 + $0x18] sm:$0xff]
    %v69 = vunpack.c.l.bf16 %v67
    %v70 = vunpack.c.h.bf16 %v67
    %v71 = vunpack.c.l.bf16 %v68
    %v72 = vunpack.c.h.bf16 %v68
    %v73 = vmul.f32 %v51, %v63
    %v74 = vmul.f32 %v52, %v64
    %v75 = vmul.f32 %v53, %v65
    %v76 = vmul.f32 %v54, %v66
    %v77 = vsub.f32 %v73, %v57
    %v78 = vsub.f32 %v74, %v58
    %v79 = vsub.f32 %v75, %v59
    %v80 = vsub.f32 %v76, %v60
    %v81 = vand.u32 2147483647, %v77
    %v82 = vand.u32 2147483647, %v78
    %v83 = vand.u32 2147483647, %v79
    %v84 = vand.u32 2147483647, %v80
    %v85 = vadd.f32 %v81, %v82
    %86 = vadd.xlane.f32.xlu0 %v85
    %v87 = vpop.xlane.xlu0 %86
    %v88 = vadd.f32 %v83, %v84
    %89 = vadd.xlane.f32.xlu0 %v88
    %v90 = vpop.xlane.xlu0 %89
    %v91 = vmul.f32 %v57, %v69
    %v92 = vmul.f32 %v58, %v70
    %v93 = vmul.f32 %v59, %v71
    %v94 = vmul.f32 %v60, %v72
    %v95 = vsub.f32 %v91, %v51
    %v96 = vsub.f32 %v92, %v52
    %v97 = vsub.f32 %v93, %v53
    %v98 = vsub.f32 %v94, %v54
    %v99 = vand.u32 2147483647, %v95
    %v100 = vand.u32 2147483647, %v96
    %v101 = vand.u32 2147483647, %v97
    %v102 = vand.u32 2147483647, %v98
    %v103 = vadd.f32 %v99, %v100
    %104 = vadd.xlane.f32.xlu0 %v103
    %v105 = vpop.xlane.xlu0 %104
    %v106 = vadd.f32 %v101, %v102
    %107 = vadd.xlane.f32.xlu0 %v106
    %v108 = vpop.xlane.xlu0 %107
    %v109 = vld [vmem:[%s3] sm:$0xff]
    %v110 = vld [vmem:[%s3 + $0x8] sm:$0xff]
    %v111 = vadd.f32 %v87, %v105
    %v112 = vadd.f32 %v90, %v108
    %v113 = vmul.f32 %v111, 0.25
    %v114 = vmul.f32 %v112, 0.25
    %v115 = vsub.f32 %v109, %v113
    %v116 = vsub.f32 %v110, %v114
    %vm117 = vcmask 7168
    %118 = vst.msk [vmem:[%s4] sm:$0xff] %vm117, %v115
    %119 = vst.msk [vmem:[%s4 + $0x8] sm:$0xff] %vm117, %v116
    // Predicated region
    $region26: #{tpu_custom_call.1} parent=1 // pred_check
      _
    $region27: #{tpu_custom_call.1} parent=1 // pred_check_branch
      %121 = sbr.rel (0) target = $region29
    $region28: #{tpu_custom_call.1} parent=1 // pred_region
      _
    $region29: #{tpu_custom_call.1} parent=1 // pred_fallthru
      _
    // Predicated region
    $region30: #{tpu_custom_call.1} parent=1 // pred_check
      _
    $region31: #{tpu_custom_call.1} parent=1 // pred_check_branch
      %123 = sbr.rel (0) target = $region33
    $region32: #{tpu_custom_call.1} parent=1 // pred_region
      _
    $region33: #{tpu_custom_call.1} parent=1 // pred_fallthru
      _
    %124 = vsyncpa [#allocation3], 1
    %125 = vsyncpa [#allocation5], 1

</llo_original>
